<compile_context>
chip_gen: v5e
topology: v5e:2x2
jax: 0.10.0
libtpu: 0.0.40
codegen_flags: <defaults>
</compile_context>

<pallas_src>
import jax
import jax.numpy as jnp
import numpy as np
from jax import lax
from jax.experimental import pallas as pl
from jax.experimental.pallas import tpu as pltpu

LANE = 128


# ---------------------------------------------------------------------------
# Fused kernel: full CNN17 forward for Bt images per grid step.
#   p1_ref  : (Bt, 8, 32)     conv1 space-to-depth patches (col = kh*16 + wo*2 + kw)
#   w1_ref  : (32, 128)       conv1 block-diag weight  -> h1 rows (Bt*8, 128), valid 0..63
#   w2_ref  : (256, 128)      conv2 kh-fused banded weight (valid out cols 0..111)
#   w3_ref  : (256, 128)      conv3 kh-fused banded weight (valid out cols 0..95)
#   wfc_ref : (6, 128, 128)   fc weight, NCHW flatten folded in, one slab per conv3 row
#   b*_ref  : (1, 128)        zero-padded bias rows
#   o_ref   : (Bt, 128)       lane-dense logits (valid cols 0..4)
#   scr     : (Bt*8+8, 128)   VMEM scratch used for the +1 row shifts and the fc reads
# ---------------------------------------------------------------------------
def _cnn17_fused_kernel(p1_ref, w1_ref, b1_ref, w2_ref, b2_ref,
                        w3_ref, b3_ref, wfc_ref, bfc_ref, o_ref, scr):
    bt = p1_ref.shape[0]
    rows = bt * 8
    f32 = jnp.float32

    # conv1 (2x2, stride 2) + relu: one matmul on space-to-depth patch columns.
    p1 = p1_ref[...].reshape(rows, 32)                 # layout-free: 2nd-minor dim is 8
    h1 = jnp.maximum(
        jnp.dot(p1, w1_ref[...], preferred_element_type=f32) + b1_ref[...], 0.0)

    # zero the scratch tail once: it provides the "next row" fill past the last image.
    scr[pl.ds(rows, 8), :] = jnp.zeros((8, LANE), f32)

    # conv2 (2x2, stride 1) + relu: both kh taps fused along K (K = 256).
    scr[pl.ds(0, rows), :] = h1
    h1n = scr[pl.ds(1, rows), :]                       # row r -> row r+1 (next H row)
    h2 = jnp.maximum(
        jnp.dot(jnp.concatenate([h1, h1n], axis=1), w2_ref[...],
                preferred_element_type=f32) + b2_ref[...], 0.0)
    # valid local rows 0..6; local row 7 mixes across images but is never read below.

    # conv3 (2x2, stride 1) + relu: same trick (valid local rows 0..5).
    scr[pl.ds(0, rows), :] = h2
    h2n = scr[pl.ds(1, rows), :]
    h3 = jnp.maximum(
        jnp.dot(jnp.concatenate([h2, h2n], axis=1), w3_ref[...],
                preferred_element_type=f32) + b3_ref[...], 0.0)

    # fc1: NCHW flatten folded into wfc_ref; 6 accumulated (Bt,128)x(128,128) dots.
    scr[pl.ds(0, rows), :] = h3
    acc = jnp.zeros((bt, LANE), f32)
    for h in range(6):                                 # static unroll, local conv3 rows
        acc = acc + jnp.dot(scr[pl.ds(h, bt, stride=8), :], wfc_ref[h],
                            preferred_element_type=f32)
    o_ref[...] = acc + bfc_ref[...]


# ---------------------------------------------------------------------------
# One-time parameter preparation (all weight re-layouts / zero padding hoisted here)
# ---------------------------------------------------------------------------
def prepare_params(params):
    w1 = np.asarray(params["w1"], np.float32)    # (8, 1, 2, 2)   [co, ci, kh, kw]
    b1 = np.asarray(params["b1"], np.float32)
    w2 = np.asarray(params["w2"], np.float32)    # (16, 8, 2, 2)
    b2 = np.asarray(params["b2"], np.float32)
    w3 = np.asarray(params["w3"], np.float32)    # (16, 16, 2, 2)
    b3 = np.asarray(params["b3"], np.float32)
    wfc = np.asarray(params["wfc"], np.float32)  # (5, 576)  torch NCHW-flatten order
    bfc = np.asarray(params["bfc"], np.float32)

    # conv1: input col = kh*16 + wo*2 + kw  (what a plain reshape of x[:, :16, :16]
    # yields) -> output col = wo*8 + co. Block-diagonal in wo.
    w1m = np.zeros((32, LANE), np.float32)
    for kh in range(2):
        for kw in range(2):
            for wo in range(8):
                for co in range(8):
                    w1m[kh * 16 + wo * 2 + kw, wo * 8 + co] = w1[co, 0, kh, kw]
    b1r = np.zeros((1, LANE), np.float32)
    for wo in range(8):
        b1r[0, wo * 8: wo * 8 + 8] = b1

    # conv2 (kh taps fused along K): input = [h1(row r) | h1(row r+1)], 128 lanes each.
    #   input col = kh*128 + w_in*8 + ci ; output col = wo*16 + co  (wo 0..6)
    w2m = np.zeros((2 * LANE, LANE), np.float32)
    for kh in range(2):
        for kw in range(2):
            for wo in range(7):
                for ci in range(8):
                    for co in range(16):
                        w2m[kh * LANE + (wo + kw) * 8 + ci,
                            wo * 16 + co] += w2[co, ci, kh, kw]
    b2r = np.zeros((1, LANE), np.float32)
    for wo in range(7):
        b2r[0, wo * 16: wo * 16 + 16] = b2

    # conv3 (kh taps fused): input col = kh*128 + w_in*16 + ci ; out col = wo*16 + co.
    w3m = np.zeros((2 * LANE, LANE), np.float32)
    for kh in range(2):
        for kw in range(2):
            for wo in range(6):
                for ci in range(16):
                    for co in range(16):
                        w3m[kh * LANE + (wo + kw) * 16 + ci,
                            wo * 16 + co] += w3[co, ci, kh, kw]
    b3r = np.zeros((1, LANE), np.float32)
    for wo in range(6):
        b3r[0, wo * 16: wo * 16 + 16] = b3

    # fc: fold torch's NCHW flatten (c*36 + h*6 + w) into the row-planar conv3 layout
    # (row h, col = w*16 + c); one zero-padded (128,128) slab per conv3 output row h.
    wfcm = np.zeros((6, LANE, LANE), np.float32)
    for h in range(6):
        for w in range(6):
            for c in range(16):
                for n in range(5):
                    wfcm[h, w * 16 + c, n] = wfc[n, c * 36 + h * 6 + w]
    bfcr = np.zeros((1, LANE), np.float32)
    bfcr[0, :5] = bfc

    return {
        "w1m": jnp.asarray(w1m), "b1r": jnp.asarray(b1r),
        "w2m": jnp.asarray(w2m), "b2r": jnp.asarray(b2r),
        "w3m": jnp.asarray(w3m), "b3r": jnp.asarray(b3r),
        "wfcm": jnp.asarray(wfcm), "bfcr": jnp.asarray(bfcr),
    }


# ---------------------------------------------------------------------------
# Forward: single fused pallas_call, Bt images per grid step, lane-dense output
# ---------------------------------------------------------------------------
def cnn17_forward(x, prep, *, bt=32):
    """x: (B, 17, 17) single-channel. Returns (B, 5) logits."""
    B = x.shape[0]
    x = x.astype(jnp.float32)

    if B <= bt:
        bt_eff = B                       # one grid step, block == full batch dim
    else:
        bt_eff = max(8, (bt // 8) * 8)   # keep (bt, ...) blocks sublane-aligned
    n_steps = (B + bt_eff - 1) // bt_eff
    b_pad = n_steps * bt_eff

    # Only per-call glue: slice + reshape (NO transpose: the kh*16 + wo*2 + kw patch
    # column order is exactly what a plain reshape yields; w1m was built to match).
    p1 = x[:, :16, :16].reshape(B, 8, 32)
    if b_pad != B:
        p1 = jnp.concatenate(
            [p1, jnp.zeros((b_pad - B, 8, 32), jnp.float32)], axis=0)

    out = pl.pallas_call(
        _cnn17_fused_kernel,
        out_shape=jax.ShapeDtypeStruct((b_pad, LANE), jnp.float32),
        grid=(n_steps,),
        in_specs=[
            pl.BlockSpec((bt_eff, 8, 32), lambda i: (i, 0, 0)),    # conv1 patches
            pl.BlockSpec((32, LANE), lambda i: (0, 0)),            # w1
            pl.BlockSpec((1, LANE), lambda i: (0, 0)),             # b1
            pl.BlockSpec((2 * LANE, LANE), lambda i: (0, 0)),      # w2 (kh-fused)
            pl.BlockSpec((1, LANE), lambda i: (0, 0)),             # b2
            pl.BlockSpec((2 * LANE, LANE), lambda i: (0, 0)),      # w3 (kh-fused)
            pl.BlockSpec((1, LANE), lambda i: (0, 0)),             # b3
            pl.BlockSpec((6, LANE, LANE), lambda i: (0, 0, 0)),    # fc slabs
            pl.BlockSpec((1, LANE), lambda i: (0, 0)),             # fc bias
        ],
        out_specs=pl.BlockSpec((bt_eff, LANE), lambda i: (i, 0)),
        scratch_shapes=[pltpu.VMEM((bt_eff * 8 + 8, LANE), jnp.float32)],
        compiler_params=pltpu.CompilerParams(
            dimension_semantics=("parallel",)),
    )(p1, prep["w1m"], prep["b1r"], prep["w2m"], prep["b2r"],
      prep["w3m"], prep["b3r"], prep["wfcm"], prep["bfcr"])

    return out[:B, :5]


cnn17_forward_jit = jax.jit(cnn17_forward, static_argnames=("bt",))


# ---------------------------------------------------------------------------
# Pure-JAX reference (matches the PyTorch module) for verification
# ---------------------------------------------------------------------------
def cnn17_reference(x, params):
    B, H, W = x.shape
    h = x.reshape(B, 1, H, W).astype(jnp.float32)

    def conv(h, w, b, stride):
        y = lax.conv_general_dilated(
            h, w, (stride, stride), "VALID",
            dimension_numbers=("NCHW", "OIHW", "NCHW"))
        return jnp.maximum(y + b.reshape(1, -1, 1, 1), 0.0)

    h = conv(h, params["w1"], params["b1"], 2)
    h = conv(h, params["w2"], params["b2"], 1)
    h = conv(h, params["w3"], params["b3"], 1)
    flat = h.reshape(B, -1)                       # NCHW flatten == torch .view
    return flat @ params["wfc"].T + params["bfc"]


# ---------------------------------------------------------------------------
def init_params(key):
    ks = jax.random.split(key, 8)
    s = 0.1
    return {
        "w1": s * jax.random.normal(ks[0], (8, 1, 2, 2), jnp.float32),
        "b1": s * jax.random.normal(ks[1], (8,), jnp.float32),
        "w2": s * jax.random.normal(ks[2], (16, 8, 2, 2), jnp.float32),
        "b2": s * jax.random.normal(ks[3], (16,), jnp.float32),
        "w3": s * jax.random.normal(ks[4], (16, 16, 2, 2), jnp.float32),
        "b3": s * jax.random.normal(ks[5], (16,), jnp.float32),
        "wfc": s * jax.random.normal(ks[6], (5, 576), jnp.float32),  # Linear(576, 5)
        "bfc": s * jax.random.normal(ks[7], (5,), jnp.float32),
    }


if __name__ == "__main__":
    # state_height = state_width = 17  (=> 8x8 -> 7x7 -> 6x6, 16*6*6 = 576 flat feats)
    B, H, W = 2, 17, 17
    key = jax.random.PRNGKey(0)
    k_x, k_p = jax.random.split(key)
    x = jax.random.normal(k_x, (B, H, W), jnp.float32)
    params = init_params(k_p)
    prep = prepare_params(params)     # one-time weight re-layout / padding

    out = jax.block_until_ready(cnn17_forward_jit(x, prep))
    ref = jax.block_until_ready(cnn17_reference(x, params))
    assert out.shape == (B, 5), out.shape
    np.testing.assert_allclose(np.asarray(out), np.asarray(ref), rtol=1e-4, atol=1e-4)

    # Exercise the multi-step grid + zero-padded batch tail path (B=12, Bt=8 -> 2 steps).
    B2 = 12
    x2 = jax.random.normal(jax.random.PRNGKey(1), (B2, H, W), jnp.float32)
    out2 = jax.block_until_ready(cnn17_forward_jit(x2, prep, bt=8))
    ref2 = jax.block_until_ready(cnn17_reference(x2, params))
    assert out2.shape == (B2, 5), out2.shape
    np.testing.assert_allclose(np.asarray(out2), np.asarray(ref2), rtol=1e-4, atol=1e-4)

    print("KERNEL_OK")
</pallas_src>

<mosaic_0001>
module attributes {stable_mosaic.version = 11 : i64} {
  func.func @_cnn17_fused_kernel(%arg0: i32, %arg1: memref<2x8x32xf32, #tpu.memory_space<vmem>>, %arg2: memref<32x128xf32, #tpu.memory_space<vmem>>, %arg3: memref<1x128xf32, #tpu.memory_space<vmem>>, %arg4: memref<256x128xf32, #tpu.memory_space<vmem>>, %arg5: memref<1x128xf32, #tpu.memory_space<vmem>>, %arg6: memref<256x128xf32, #tpu.memory_space<vmem>>, %arg7: memref<1x128xf32, #tpu.memory_space<vmem>>, %arg8: memref<6x128x128xf32, #tpu.memory_space<vmem>>, %arg9: memref<1x128xf32, #tpu.memory_space<vmem>>, %arg10: memref<2x128xf32, #tpu.memory_space<vmem>>, %arg11: memref<24x128xf32, #tpu.memory_space<vmem>>) attributes {dimension_semantics = [#tpu.dimension_semantics<parallel>], iteration_bounds = array<i64: 1>, scalar_prefetch = 0 : i64, scratch_operands = 1 : i64, tpu.core_type = #tpu.core_type<tc>, window_params = [{transform_indices = @transform_0, window_bounds = array<i64: 2, 8, 32>}, {pipeline_mode = #tpu.pipeline_mode<synchronous>, transform_indices = @transform_1, window_bounds = array<i64: 32, 128>}, {pipeline_mode = #tpu.pipeline_mode<synchronous>, transform_indices = @transform_2, window_bounds = array<i64: 1, 128>}, {pipeline_mode = #tpu.pipeline_mode<synchronous>, transform_indices = @transform_3, window_bounds = array<i64: 256, 128>}, {pipeline_mode = #tpu.pipeline_mode<synchronous>, transform_indices = @transform_4, window_bounds = array<i64: 1, 128>}, {pipeline_mode = #tpu.pipeline_mode<synchronous>, transform_indices = @transform_5, window_bounds = array<i64: 256, 128>}, {pipeline_mode = #tpu.pipeline_mode<synchronous>, transform_indices = @transform_6, window_bounds = array<i64: 1, 128>}, {pipeline_mode = #tpu.pipeline_mode<synchronous>, transform_indices = @transform_7, window_bounds = array<i64: 6, 128, 128>}, {pipeline_mode = #tpu.pipeline_mode<synchronous>, transform_indices = @transform_8, window_bounds = array<i64: 1, 128>}, {transform_indices = @transform_9, window_bounds = array<i64: 2, 128>}]} {
    %c0 = arith.constant 0 : index
    %c0_0 = arith.constant 0 : index
    %c0_1 = arith.constant 0 : index
    %0 = vector.load %arg1[%c0, %c0_0, %c0_1] : memref<2x8x32xf32, #tpu.memory_space<vmem>>, vector<2x8x32xf32>
    %1 = vector.shape_cast %0 : vector<2x8x32xf32> to vector<16x32xf32>
    %c0_2 = arith.constant 0 : index
    %c0_3 = arith.constant 0 : index
    %2 = vector.load %arg2[%c0_2, %c0_3] : memref<32x128xf32, #tpu.memory_space<vmem>>, vector<32x128xf32>
    %cst = arith.constant dense<0.000000e+00> : vector<16x128xf32>
    %3 = tpu.matmul %1, %2, %cst {dimension_numbers = #tpu.dot_dimension_numbers<[1], [0], [0], [1], [0, 0, 1, 1], [], []>} : vector<16x32xf32>, vector<32x128xf32>, vector<16x128xf32> -> vector<16x128xf32>
    %c0_4 = arith.constant 0 : index
    %c0_5 = arith.constant 0 : index
    %4 = vector.load %arg3[%c0_4, %c0_5] : memref<1x128xf32, #tpu.memory_space<vmem>>, vector<1x128xf32>
    %5 = vector.broadcast %4 : vector<1x128xf32> to vector<16x128xf32>
    %6 = arith.addf %3, %5 : vector<16x128xf32>
    %cst_6 = arith.constant 0.000000e+00 : f32
    %7 = vector.broadcast %cst_6 : f32 to vector<16x128xf32>
    %8 = arith.maximumf %6, %7 : vector<16x128xf32>
    %cst_7 = arith.constant 0.000000e+00 : f32
    %9 = vector.broadcast %cst_7 : f32 to vector<8x128xf32>
    %c16 = arith.constant 16 : index
    %c0_8 = arith.constant 0 : index
    %10 = vector.load %arg11[%c16, %c0_8] : memref<24x128xf32, #tpu.memory_space<vmem>>, vector<8x128xf32>
    tpu.vector_store %arg11[%c16, %c0_8], %9 {strides = array<i32>} : memref<24x128xf32, #tpu.memory_space<vmem>>, vector<8x128xf32>,
    %c0_9 = arith.constant 0 : index
    %c0_10 = arith.constant 0 : index
    %11 = vector.load %arg11[%c0_9, %c0_10] : memref<24x128xf32, #tpu.memory_space<vmem>>, vector<16x128xf32>
    tpu.vector_store %arg11[%c0_9, %c0_10], %8 {strides = array<i32>} : memref<24x128xf32, #tpu.memory_space<vmem>>, vector<16x128xf32>,
    %c1 = arith.constant 1 : index
    %c0_11 = arith.constant 0 : index
    %12 = vector.load %arg11[%c1, %c0_11] : memref<24x128xf32, #tpu.memory_space<vmem>>, vector<16x128xf32>
    %13 = tpu.concatenate %8, %12 in 1 : vector<16x128xf32>, vector<16x128xf32> -> vector<16x256xf32>
    %c0_12 = arith.constant 0 : index
    %c0_13 = arith.constant 0 : index
    %14 = vector.load %arg4[%c0_12, %c0_13] : memref<256x128xf32, #tpu.memory_space<vmem>>, vector<256x128xf32>
    %cst_14 = arith.constant dense<0.000000e+00> : vector<16x128xf32>
    %15 = tpu.matmul %13, %14, %cst_14 {dimension_numbers = #tpu.dot_dimension_numbers<[1], [0], [0], [1], [0, 0, 1, 1], [], []>} : vector<16x256xf32>, vector<256x128xf32>, vector<16x128xf32> -> vector<16x128xf32>
    %c0_15 = arith.constant 0 : index
    %c0_16 = arith.constant 0 : index
    %16 = vector.load %arg5[%c0_15, %c0_16] : memref<1x128xf32, #tpu.memory_space<vmem>>, vector<1x128xf32>
    %17 = vector.broadcast %16 : vector<1x128xf32> to vector<16x128xf32>
    %18 = arith.addf %15, %17 : vector<16x128xf32>
    %cst_17 = arith.constant 0.000000e+00 : f32
    %19 = vector.broadcast %cst_17 : f32 to vector<16x128xf32>
    %20 = arith.maximumf %18, %19 : vector<16x128xf32>
    %c0_18 = arith.constant 0 : index
    %c0_19 = arith.constant 0 : index
    %21 = vector.load %arg11[%c0_18, %c0_19] : memref<24x128xf32, #tpu.memory_space<vmem>>, vector<16x128xf32>
    tpu.vector_store %arg11[%c0_18, %c0_19], %20 {strides = array<i32>} : memref<24x128xf32, #tpu.memory_space<vmem>>, vector<16x128xf32>,
    %c1_20 = arith.constant 1 : index
    %c0_21 = arith.constant 0 : index
    %22 = vector.load %arg11[%c1_20, %c0_21] : memref<24x128xf32, #tpu.memory_space<vmem>>, vector<16x128xf32>
    %23 = tpu.concatenate %20, %22 in 1 : vector<16x128xf32>, vector<16x128xf32> -> vector<16x256xf32>
    %c0_22 = arith.constant 0 : index
    %c0_23 = arith.constant 0 : index
    %24 = vector.load %arg6[%c0_22, %c0_23] : memref<256x128xf32, #tpu.memory_space<vmem>>, vector<256x128xf32>
    %cst_24 = arith.constant dense<0.000000e+00> : vector<16x128xf32>
    %25 = tpu.matmul %23, %24, %cst_24 {dimension_numbers = #tpu.dot_dimension_numbers<[1], [0], [0], [1], [0, 0, 1, 1], [], []>} : vector<16x256xf32>, vector<256x128xf32>, vector<16x128xf32> -> vector<16x128xf32>
    %c0_25 = arith.constant 0 : index
    %c0_26 = arith.constant 0 : index
    %26 = vector.load %arg7[%c0_25, %c0_26] : memref<1x128xf32, #tpu.memory_space<vmem>>, vector<1x128xf32>
    %27 = vector.broadcast %26 : vector<1x128xf32> to vector<16x128xf32>
    %28 = arith.addf %25, %27 : vector<16x128xf32>
    %cst_27 = arith.constant 0.000000e+00 : f32
    %29 = vector.broadcast %cst_27 : f32 to vector<16x128xf32>
    %30 = arith.maximumf %28, %29 : vector<16x128xf32>
    %c0_28 = arith.constant 0 : index
    %c0_29 = arith.constant 0 : index
    %31 = vector.load %arg11[%c0_28, %c0_29] : memref<24x128xf32, #tpu.memory_space<vmem>>, vector<16x128xf32>
    tpu.vector_store %arg11[%c0_28, %c0_29], %30 {strides = array<i32>} : memref<24x128xf32, #tpu.memory_space<vmem>>, vector<16x128xf32>,
    %cst_30 = arith.constant 0.000000e+00 : f32
    %32 = vector.broadcast %cst_30 : f32 to vector<2x128xf32>
    %c0_31 = arith.constant 0 : index
    %c0_32 = arith.constant 0 : index
    %33 = tpu.strided_load %arg11[%c0_31, %c0_32] {strides = array<i32: 8, 1>} : memref<24x128xf32, #tpu.memory_space<vmem>>, vector<2x128xf32>
    %c0_33 = arith.constant 0 : index
    %c0_34 = arith.constant 0 : index
    %c0_35 = arith.constant 0 : index
    %34 = vector.load %arg8[%c0_33, %c0_34, %c0_35] : memref<6x128x128xf32, #tpu.memory_space<vmem>>, vector<1x128x128xf32>
    %35 = vector.shape_cast %34 : vector<1x128x128xf32> to vector<128x128xf32>
    %cst_36 = arith.constant dense<0.000000e+00> : vector<2x128xf32>
    %36 = tpu.matmul %33, %35, %cst_36 {dimension_numbers = #tpu.dot_dimension_numbers<[1], [0], [0], [1], [0, 0, 1, 1], [], []>} : vector<2x128xf32>, vector<128x128xf32>, vector<2x128xf32> -> vector<2x128xf32>
    %37 = arith.addf %32, %36 : vector<2x128xf32>
    %c1_37 = arith.constant 1 : index
    %c0_38 = arith.constant 0 : index
    %38 = tpu.strided_load %arg11[%c1_37, %c0_38] {strides = array<i32: 8, 1>} : memref<24x128xf32, #tpu.memory_space<vmem>>, vector<2x128xf32>
    %c1_39 = arith.constant 1 : index
    %c0_40 = arith.constant 0 : index
    %c0_41 = arith.constant 0 : index
    %39 = vector.load %arg8[%c1_39, %c0_40, %c0_41] : memref<6x128x128xf32, #tpu.memory_space<vmem>>, vector<1x128x128xf32>
    %40 = vector.shape_cast %39 : vector<1x128x128xf32> to vector<128x128xf32>
    %cst_42 = arith.constant dense<0.000000e+00> : vector<2x128xf32>
    %41 = tpu.matmul %38, %40, %cst_42 {dimension_numbers = #tpu.dot_dimension_numbers<[1], [0], [0], [1], [0, 0, 1, 1], [], []>} : vector<2x128xf32>, vector<128x128xf32>, vector<2x128xf32> -> vector<2x128xf32>
    %42 = arith.addf %37, %41 : vector<2x128xf32>
    %c2 = arith.constant 2 : index
    %c0_43 = arith.constant 0 : index
    %43 = tpu.strided_load %arg11[%c2, %c0_43] {strides = array<i32: 8, 1>} : memref<24x128xf32, #tpu.memory_space<vmem>>, vector<2x128xf32>
    %c2_44 = arith.constant 2 : index
    %c0_45 = arith.constant 0 : index
    %c0_46 = arith.constant 0 : index
    %44 = vector.load %arg8[%c2_44, %c0_45, %c0_46] : memref<6x128x128xf32, #tpu.memory_space<vmem>>, vector<1x128x128xf32>
    %45 = vector.shape_cast %44 : vector<1x128x128xf32> to vector<128x128xf32>
    %cst_47 = arith.constant dense<0.000000e+00> : vector<2x128xf32>
    %46 = tpu.matmul %43, %45, %cst_47 {dimension_numbers = #tpu.dot_dimension_numbers<[1], [0], [0], [1], [0, 0, 1, 1], [], []>} : vector<2x128xf32>, vector<128x128xf32>, vector<2x128xf32> -> vector<2x128xf32>
    %47 = arith.addf %42, %46 : vector<2x128xf32>
    %c3 = arith.constant 3 : index
    %c0_48 = arith.constant 0 : index
    %48 = tpu.strided_load %arg11[%c3, %c0_48] {strides = array<i32: 8, 1>} : memref<24x128xf32, #tpu.memory_space<vmem>>, vector<2x128xf32>
    %c3_49 = arith.constant 3 : index
    %c0_50 = arith.constant 0 : index
    %c0_51 = arith.constant 0 : index
    %49 = vector.load %arg8[%c3_49, %c0_50, %c0_51] : memref<6x128x128xf32, #tpu.memory_space<vmem>>, vector<1x128x128xf32>
    %50 = vector.shape_cast %49 : vector<1x128x128xf32> to vector<128x128xf32>
    %cst_52 = arith.constant dense<0.000000e+00> : vector<2x128xf32>
    %51 = tpu.matmul %48, %50, %cst_52 {dimension_numbers = #tpu.dot_dimension_numbers<[1], [0], [0], [1], [0, 0, 1, 1], [], []>} : vector<2x128xf32>, vector<128x128xf32>, vector<2x128xf32> -> vector<2x128xf32>
    %52 = arith.addf %47, %51 : vector<2x128xf32>
    %c4 = arith.constant 4 : index
    %c0_53 = arith.constant 0 : index
    %53 = tpu.strided_load %arg11[%c4, %c0_53] {strides = array<i32: 8, 1>} : memref<24x128xf32, #tpu.memory_space<vmem>>, vector<2x128xf32>
    %c4_54 = arith.constant 4 : index
    %c0_55 = arith.constant 0 : index
    %c0_56 = arith.constant 0 : index
    %54 = vector.load %arg8[%c4_54, %c0_55, %c0_56] : memref<6x128x128xf32, #tpu.memory_space<vmem>>, vector<1x128x128xf32>
    %55 = vector.shape_cast %54 : vector<1x128x128xf32> to vector<128x128xf32>
    %cst_57 = arith.constant dense<0.000000e+00> : vector<2x128xf32>
    %56 = tpu.matmul %53, %55, %cst_57 {dimension_numbers = #tpu.dot_dimension_numbers<[1], [0], [0], [1], [0, 0, 1, 1], [], []>} : vector<2x128xf32>, vector<128x128xf32>, vector<2x128xf32> -> vector<2x128xf32>
    %57 = arith.addf %52, %56 : vector<2x128xf32>
    %c5 = arith.constant 5 : index
    %c0_58 = arith.constant 0 : index
    %58 = tpu.strided_load %arg11[%c5, %c0_58] {strides = array<i32: 8, 1>} : memref<24x128xf32, #tpu.memory_space<vmem>>, vector<2x128xf32>
    %c5_59 = arith.constant 5 : index
    %c0_60 = arith.constant 0 : index
    %c0_61 = arith.constant 0 : index
    %59 = vector.load %arg8[%c5_59, %c0_60, %c0_61] : memref<6x128x128xf32, #tpu.memory_space<vmem>>, vector<1x128x128xf32>
    %60 = vector.shape_cast %59 : vector<1x128x128xf32> to vector<128x128xf32>
    %cst_62 = arith.constant dense<0.000000e+00> : vector<2x128xf32>
    %61 = tpu.matmul %58, %60, %cst_62 {dimension_numbers = #tpu.dot_dimension_numbers<[1], [0], [0], [1], [0, 0, 1, 1], [], []>} : vector<2x128xf32>, vector<128x128xf32>, vector<2x128xf32> -> vector<2x128xf32>
    %62 = arith.addf %57, %61 : vector<2x128xf32>
    %c0_63 = arith.constant 0 : index
    %c0_64 = arith.constant 0 : index
    %63 = vector.load %arg9[%c0_63, %c0_64] : memref<1x128xf32, #tpu.memory_space<vmem>>, vector<1x128xf32>
    %64 = vector.broadcast %63 : vector<1x128xf32> to vector<2x128xf32>
    %65 = arith.addf %62, %64 : vector<2x128xf32>
    %c0_65 = arith.constant 0 : index
    %c0_66 = arith.constant 0 : index
    %66 = vector.load %arg10[%c0_65, %c0_66] : memref<2x128xf32, #tpu.memory_space<vmem>>, vector<2x128xf32>
    tpu.vector_store %arg10[%c0_65, %c0_66], %65 {strides = array<i32>} : memref<2x128xf32, #tpu.memory_space<vmem>>, vector<2x128xf32>,
    return
  }
  func.func @transform_0(%arg0: i32) -> (i32, i32, i32) {
    %c0_i32 = arith.constant 0 : i32
    %c0_i32_0 = arith.constant 0 : i32
    %c0_i32_1 = arith.constant 0 : i32
    return %arg0, %c0_i32, %c0_i32_0 : i32, i32, i32
  }
  func.func @transform_1(%arg0: i32) -> (i32, i32) {
    %c0_i32 = arith.constant 0 : i32
    %c0_i32_0 = arith.constant 0 : i32
    %c0_i32_1 = arith.constant 0 : i32
    return %c0_i32, %c0_i32_0 : i32, i32
  }
  func.func @transform_2(%arg0: i32) -> (i32, i32) {
    %c0_i32 = arith.constant 0 : i32
    %c0_i32_0 = arith.constant 0 : i32
    %c0_i32_1 = arith.constant 0 : i32
    return %c0_i32, %c0_i32_0 : i32, i32
  }
  func.func @transform_3(%arg0: i32) -> (i32, i32) {
    %c0_i32 = arith.constant 0 : i32
    %c0_i32_0 = arith.constant 0 : i32
    %c0_i32_1 = arith.constant 0 : i32
    return %c0_i32, %c0_i32_0 : i32, i32
  }
  func.func @transform_4(%arg0: i32) -> (i32, i32) {
    %c0_i32 = arith.constant 0 : i32
    %c0_i32_0 = arith.constant 0 : i32
    %c0_i32_1 = arith.constant 0 : i32
    return %c0_i32, %c0_i32_0 : i32, i32
  }
  func.func @transform_5(%arg0: i32) -> (i32, i32) {
    %c0_i32 = arith.constant 0 : i32
    %c0_i32_0 = arith.constant 0 : i32
    %c0_i32_1 = arith.constant 0 : i32
    return %c0_i32, %c0_i32_0 : i32, i32
  }
  func.func @transform_6(%arg0: i32) -> (i32, i32) {
    %c0_i32 = arith.constant 0 : i32
    %c0_i32_0 = arith.constant 0 : i32
    %c0_i32_1 = arith.constant 0 : i32
    return %c0_i32, %c0_i32_0 : i32, i32
  }
  func.func @transform_7(%arg0: i32) -> (i32, i32, i32) {
    %c0_i32 = arith.constant 0 : i32
    %c0_i32_0 = arith.constant 0 : i32
    %c0_i32_1 = arith.constant 0 : i32
    %c0_i32_2 = arith.constant 0 : i32
    return %c0_i32, %c0_i32_0, %c0_i32_1 : i32, i32, i32
  }
  func.func @transform_8(%arg0: i32) -> (i32, i32) {
    %c0_i32 = arith.constant 0 : i32
    %c0_i32_0 = arith.constant 0 : i32
    %c0_i32_1 = arith.constant 0 : i32
    return %c0_i32, %c0_i32_0 : i32, i32
  }
  func.func @transform_9(%arg0: i32) -> (i32, i32) {
    %c0_i32 = arith.constant 0 : i32
    %c0_i32_0 = arith.constant 0 : i32
    return %arg0, %c0_i32 : i32, i32
  }
}

</mosaic_0001>

<llo_original>
// kernel: cnn17_forward.1
$region0: #{cnn17_forward.1}
  #allocation0 [shape = 'u32[]', space=smem, size = 0x4, offset = 0x4, fixed_abs, tag = 'smem constant byte address 0x4 - core index']
  #allocation1 [shape = 'u32[72,128]{1,0:T(1,128)}', space=vmem, size = 0x9000, scoped, tag = 'internal scratch']
  #allocation2 [shape = 'f32[24,128]{1,0:T(8,128)}', space=vmem, size = 0x3000, scoped, tag = 'scratch operand']
  %s0 = inlined_call_operand.vmem [shape: f32[2,8,32], index: 0, kind: input, shape index: {}]
  %s1 = inlined_call_operand.vmem [shape: f32[32,128], index: 1, kind: input, shape index: {}]
  %s2 = inlined_call_operand.vmem [shape: f32[1,128], index: 2, kind: input, shape index: {}]
  %s3 = inlined_call_operand.hbm [shape: f32[256,128], index: 3, kind: input, shape index: {}]
  %s4 = inlined_call_operand.vmem [shape: f32[1,128], index: 4, kind: input, shape index: {}]
  %s5 = inlined_call_operand.hbm [shape: f32[256,128], index: 5, kind: input, shape index: {}]
  %s6 = inlined_call_operand.vmem [shape: f32[1,128], index: 6, kind: input, shape index: {}]
  %s7 = inlined_call_operand.hbm [shape: f32[6,128,128], index: 7, kind: input, shape index: {}]
  %s8 = inlined_call_operand.vmem [shape: f32[1,128], index: 8, kind: input, shape index: {}]
  %s9 = inlined_call_operand.hbm [shape: f32[2,128], index: 9, kind: output, shape index: {}]
  %s10 = sld [smem:[#allocation0]]
  $region58: #{cnn17_forward.1} parent=0
    _
  %s12 = ssub.s32 1, %s10
  %s13 = scalar_select 0, %s12, %s10
  $region1: #{cnn17_forward.1} parent=0
    #allocation3 [shape = 'u8[131072]{0}', space=vmem, size = 0x20000, scoped, tag = 'input window, operand 3, single buffered']
    #allocation4 [shape = 's32[1]{0}', space=sflag, size = 0x4, scoped, tag = 'scoped memory for cnn17_forward.1']
    #allocation5 [shape = 's32[1]{0}', space=sflag, size = 0x4, scoped, tag = 'scoped memory for cnn17_forward.1']
    #allocation6 [shape = 'u8[131072]{0}', space=vmem, size = 0x20000, scoped, tag = 'input window, operand 5, single buffered']
    #allocation7 [shape = 's32[1]{0}', space=sflag, size = 0x4, scoped, tag = 'scoped memory for cnn17_forward.1']
    #allocation8 [shape = 'u8[393216]{0}', space=vmem, size = 0x60000, scoped, tag = 'input window, operand 7, single buffered']
    #allocation9 [shape = 'u8[1024]{0}', space=vmem, size = 0x400, scoped, tag = 'output window, operand 0, single buffered']
    %14 = vsyncpa [#allocation4], 0
    %15 = vsyncpa [#allocation7], 0
    %16 = vsyncpa [#allocation5], 0
    // Predicated region
    $region2: #{cnn17_forward.1} parent=1 // pred_check
      _
    $region3: #{cnn17_forward.1} parent=1 // pred_check_branch
      %18 = sbr.rel (0) target = $region5
    $region4: #{cnn17_forward.1} parent=1 // pred_region
      _
    $region5: #{cnn17_forward.1} parent=1 // pred_fallthru
      _
    // Predicated region
    $region6: #{cnn17_forward.1} parent=1 // pred_check
      _
    $region7: #{cnn17_forward.1} parent=1 // pred_check_branch
      %20 = sbr.rel (0) target = $region9
    $region8: #{cnn17_forward.1} parent=1 // pred_region
      _
    $region9: #{cnn17_forward.1} parent=1 // pred_fallthru
      _
    // Predicated region
    $region10: #{cnn17_forward.1} parent=1 // pred_check
      _
    $region11: #{cnn17_forward.1} parent=1 // pred_check_branch
      %22 = sbr.rel (0) target = $region13
    $region12: #{cnn17_forward.1} parent=1 // pred_region
      _
    $region13: #{cnn17_forward.1} parent=1 // pred_fallthru
      _
    // Predicated region
    $region14: #{cnn17_forward.1} parent=1 // pred_check
      _
    $region15: #{cnn17_forward.1} parent=1 // pred_check_branch
      %24 = sbr.rel (0) target = $region17
    $region16: #{cnn17_forward.1} parent=1 // pred_region
      %26 = vsyncadd [#allocation4], 0
      %s27 = sshll.u32 %s3, 4
      %s28 = int_to_ptr.hbm [resolvable:$true] %s27
      %s29 = sshll.u32 [#allocation3], 4
      %s30 = int_to_ptr.vmem [resolvable:$true] %s29
      %35 = dma.hbm_to_vmem [thread:$0]  %s28, 4096, %s30, [#allocation4], 128, 128, 8
    $region17: #{cnn17_forward.1} parent=1 // pred_fallthru
      _
    // Predicated region
    $region18: #{cnn17_forward.1} parent=1 // pred_check
      _
    $region19: #{cnn17_forward.1} parent=1 // pred_check_branch
      %37 = sbr.rel (0) target = $region21
    $region20: #{cnn17_forward.1} parent=1 // pred_region
      _
    $region21: #{cnn17_forward.1} parent=1 // pred_fallthru
      _
    // Predicated region
    $region22: #{cnn17_forward.1} parent=1 // pred_check
      _
    $region23: #{cnn17_forward.1} parent=1 // pred_check_branch
      %39 = sbr.rel (0) target = $region25
    $region24: #{cnn17_forward.1} parent=1 // pred_region
      %41 = vsyncadd [#allocation7], 0
      %s42 = sshll.u32 %s5, 4
      %s43 = int_to_ptr.hbm [resolvable:$true] %s42
      %s44 = sshll.u32 [#allocation6], 4
      %s45 = int_to_ptr.vmem [resolvable:$true] %s44
      %50 = dma.hbm_to_vmem [thread:$0]  %s43, 4096, %s45, [#allocation7], 128, 128, 8
    $region25: #{cnn17_forward.1} parent=1 // pred_fallthru
      _
    // Predicated region
    $region26: #{cnn17_forward.1} parent=1 // pred_check
      _
    $region27: #{cnn17_forward.1} parent=1 // pred_check_branch
      %52 = sbr.rel (0) target = $region29
    $region28: #{cnn17_forward.1} parent=1 // pred_region
      _
    $region29: #{cnn17_forward.1} parent=1 // pred_fallthru
      _
    // Predicated region
    $region30: #{cnn17_forward.1} parent=1 // pred_check
      _
    $region31: #{cnn17_forward.1} parent=1 // pred_check_branch
      %54 = sbr.rel (0) target = $region33
    $region32: #{cnn17_forward.1} parent=1 // pred_region
      %56 = vsyncadd [#allocation7], 0
      %s57 = sshll.u32 %s7, 4
      %s58 = int_to_ptr.hbm [resolvable:$true] %s57
      %s59 = sshll.u32 [#allocation8], 4
      %s60 = int_to_ptr.vmem [resolvable:$true] %s59
      %65 = dma.hbm_to_vmem [thread:$0]  %s58, 12288, %s60, [#allocation7], 128, 128, 8
    $region33: #{cnn17_forward.1} parent=1 // pred_fallthru
      _
    // Predicated region
    $region34: #{cnn17_forward.1} parent=1 // pred_check
      _
    $region35: #{cnn17_forward.1} parent=1 // pred_check_branch
      %67 = sbr.rel (0) target = $region37
    $region36: #{cnn17_forward.1} parent=1 // pred_region
      _
    $region37: #{cnn17_forward.1} parent=1 // pred_fallthru
      _
    // Predicated region
    $region38: #{cnn17_forward.1} parent=1 // pred_check
      _
    $region39: #{cnn17_forward.1} parent=1 // pred_check_branch
      %69 = sbr.rel (0) target = $region41
    $region40: #{cnn17_forward.1} parent=1 // pred_region
      %71 = dma.done [#allocation4], 4096
    $region41: #{cnn17_forward.1} parent=1 // pred_fallthru
      _
    // Predicated region
    $region42: #{cnn17_forward.1} parent=1 // pred_check
      _
    $region43: #{cnn17_forward.1} parent=1 // pred_check_branch
      %73 = sbr.rel (0) target = $region45
    $region44: #{cnn17_forward.1} parent=1 // pred_region
      %75 = dma.done [#allocation7], 4096
    $region45: #{cnn17_forward.1} parent=1 // pred_fallthru
      _
    // Predicated region
    $region46: #{cnn17_forward.1} parent=1 // pred_check
      _
    $region47: #{cnn17_forward.1} parent=1 // pred_check_branch
      %77 = sbr.rel (0) target = $region49
    $region48: #{cnn17_forward.1} parent=1 // pred_region
      %79 = dma.done [#allocation7], 12288
    $region49: #{cnn17_forward.1} parent=1 // pred_fallthru
      _
    %v80 = vld [vmem:[%s0] sm:$0xff]
    %v81 = vld [vmem:[%s0 + $0x8] sm:$0xff]
    %v82 = vld [vmem:[%s1] sm:$0xff]
    %v83 = vld [vmem:[%s1 + $0x8] sm:$0xff]
    %v84 = vld [vmem:[%s1 + $0x10] sm:$0xff]
    %v85 = vld [vmem:[%s1 + $0x18] sm:$0xff]
    %v86 = vld [vmem:[%s2] sm:$0x1]
    %v88 = vperm.slane %v86, 0
    %vm90 = vcmask 261120
    %v92 = vsel %vm90, %v80, 0
    %v95 = vsel %vm90, %v81, 0
    %97 = vmatpush.msra.mxu0 0.0
    %98 = vmatpush.msra.mxu0 0.0
    %99 = vmatpush.msra.mxu0 0.0
    %100 = vmatpush.msra.mxu0 0.0
    %101 = vmatpush.msra.mxu0 0.0
    %102 = vmatpush.msra.mxu0 0.0
    %103 = vmatpush.msra.mxu0 0.0
    %104 = vmatpush.msra.mxu0 0.0
    %105 = vmatpush.msra.mxu0 0.0
    %106 = vmatpush.msra.mxu0 0.0
    %107 = vmatpush.msra.mxu0 0.0
    %108 = vmatpush.msra.mxu0 0.0
    %109 = vmatpush.msra.mxu0 %v85
    %110 = vmatpush.msra.mxu0 %v84
    %111 = vmatpush.msra.mxu0 %v83
    %112 = vmatpush.msra.mxu0 %v82
    %113 = vmatmul.f32.gmra.mxu0 %v92
    %v114 = vpop.f32.mrf.mxu0
    %v115 = vadd.f32 %v88, %v114
    %116 = vmatmul.f32.gmra.mxu0 %v95
    %v117 = vpop.f32.mrf.mxu0
    %v118 = vadd.f32 %v88, %v117
    %119 = vdwg.mxu0
    %v120 = vmax.f32 %v115, 0.0
    %v121 = vmax.f32 %v118, 0.0
    %122 = vst [vmem:[#allocation2 + $0x10] sm:$0xff] 0.0
    %123 = vst [vmem:[#allocation2] sm:$0xff] %v120
    %124 = vst [vmem:[#allocation2 + $0x8] sm:$0xff] %v121
    %v125 = vld [vmem:[#allocation2 + $0x1] sm:$0xff]
    %v126 = vld [vmem:[#allocation2 + $0x9] sm:$0xff]
    %v127 = vld [vmem:[#allocation3] sm:$0xff]
    %v128 = vld [vmem:[#allocation3 + $0x8] sm:$0xff]
    %v129 = vld [vmem:[#allocation3 + $0x10] sm:$0xff]
    %v130 = vld [vmem:[#allocation3 + $0x18] sm:$0xff]
    %v131 = vld [vmem:[#allocation3 + $0x20] sm:$0xff]
    %v132 = vld [vmem:[#allocation3 + $0x28] sm:$0xff]
    %v133 = vld [vmem:[#allocation3 + $0x30] sm:$0xff]
    %v134 = vld [vmem:[#allocation3 + $0x38] sm:$0xff]
    %v135 = vld [vmem:[#allocation3 + $0x40] sm:$0xff]
    %v136 = vld [vmem:[#allocation3 + $0x48] sm:$0xff]
    %v137 = vld [vmem:[#allocation3 + $0x50] sm:$0xff]
    %v138 = vld [vmem:[#allocation3 + $0x58] sm:$0xff]
    %v139 = vld [vmem:[#allocation3 + $0x60] sm:$0xff]
    %v140 = vld [vmem:[#allocation3 + $0x68] sm:$0xff]
    %v141 = vld [vmem:[#allocation3 + $0x70] sm:$0xff]
    %v142 = vld [vmem:[#allocation3 + $0x78] sm:$0xff]
    %v143 = vld [vmem:[#allocation3 + $0x80] sm:$0xff]
    %v144 = vld [vmem:[#allocation3 + $0x88] sm:$0xff]
    %v145 = vld [vmem:[#allocation3 + $0x90] sm:$0xff]
    %v146 = vld [vmem:[#allocation3 + $0x98] sm:$0xff]
    %v147 = vld [vmem:[#allocation3 + $0xa0] sm:$0xff]
    %v148 = vld [vmem:[#allocation3 + $0xa8] sm:$0xff]
    %v149 = vld [vmem:[#allocation3 + $0xb0] sm:$0xff]
    %v150 = vld [vmem:[#allocation3 + $0xb8] sm:$0xff]
    %v151 = vld [vmem:[#allocation3 + $0xc0] sm:$0xff]
    %v152 = vld [vmem:[#allocation3 + $0xc8] sm:$0xff]
    %v153 = vld [vmem:[#allocation3 + $0xd0] sm:$0xff]
    %v154 = vld [vmem:[#allocation3 + $0xd8] sm:$0xff]
    %v155 = vld [vmem:[#allocation3 + $0xe0] sm:$0xff]
    %v156 = vld [vmem:[#allocation3 + $0xe8] sm:$0xff]
    %v157 = vld [vmem:[#allocation3 + $0xf0] sm:$0xff]
    %v158 = vld [vmem:[#allocation3 + $0xf8] sm:$0xff]
    %v159 = vld [vmem:[%s4] sm:$0x1]
    %v161 = vperm.slane %v159, 0
    %163 = vmatpush.msra.mxu0 %v142
    %164 = vmatpush.msra.mxu0 %v141
    %165 = vmatpush.msra.mxu0 %v140
    %166 = vmatpush.msra.mxu0 %v139
    %167 = vmatpush.msra.mxu0 %v138
    %168 = vmatpush.msra.mxu0 %v137
    %169 = vmatpush.msra.mxu0 %v136
    %170 = vmatpush.msra.mxu0 %v135
    %171 = vmatpush.msra.mxu0 %v134
    %172 = vmatpush.msra.mxu0 %v133
    %173 = vmatpush.msra.mxu0 %v132
    %174 = vmatpush.msra.mxu0 %v131
    %175 = vmatpush.msra.mxu0 %v130
    %176 = vmatpush.msra.mxu0 %v129
    %177 = vmatpush.msra.mxu0 %v128
    %178 = vmatpush.msra.mxu0 %v127
    %179 = vmatmul.f32.gmra.mxu0 %v120
    %v180 = vpop.f32.mrf.mxu0
    %v181 = vadd.f32 %v161, %v180
    %182 = vmatmul.f32.gmra.mxu0 %v121
    %v183 = vpop.f32.mrf.mxu0
    %v184 = vadd.f32 %v161, %v183
    %185 = vdwg.mxu0
    %186 = vmatpush.msra.mxu0 %v158
    %187 = vmatpush.msra.mxu0 %v157
    %188 = vmatpush.msra.mxu0 %v156
    %189 = vmatpush.msra.mxu0 %v155
    %190 = vmatpush.msra.mxu0 %v154
    %191 = vmatpush.msra.mxu0 %v153
    %192 = vmatpush.msra.mxu0 %v152
    %193 = vmatpush.msra.mxu0 %v151
    %194 = vmatpush.msra.mxu0 %v150
    %195 = vmatpush.msra.mxu0 %v149
    %196 = vmatpush.msra.mxu0 %v148
    %197 = vmatpush.msra.mxu0 %v147
    %198 = vmatpush.msra.mxu0 %v146
    %199 = vmatpush.msra.mxu0 %v145
    %200 = vmatpush.msra.mxu0 %v144
    %201 = vmatpush.msra.mxu0 %v143
    %202 = vmatmul.f32.gmra.mxu0 %v125
    %v203 = vpop.f32.mrf.mxu0
    %v204 = vadd.f32 %v181, %v203
    %205 = vmatmul.f32.gmra.mxu0 %v126
    %v206 = vpop.f32.mrf.mxu0
    %v207 = vadd.f32 %v184, %v206
    %208 = vdwg.mxu0
    %v209 = vmax.f32 %v204, 0.0
    %v210 = vmax.f32 %v207, 0.0
    %211 = vst [vmem:[#allocation2] sm:$0xff] %v209
    %212 = vst [vmem:[#allocation2 + $0x8] sm:$0xff] %v210
    %v213 = vld [vmem:[#allocation2 + $0x1] sm:$0xff]
    %v214 = vld [vmem:[#allocation2 + $0x9] sm:$0xff]
    %v215 = vld [vmem:[#allocation6] sm:$0xff]
    %v216 = vld [vmem:[#allocation6 + $0x8] sm:$0xff]
    %v217 = vld [vmem:[#allocation6 + $0x10] sm:$0xff]
    %v218 = vld [vmem:[#allocation6 + $0x18] sm:$0xff]
    %v219 = vld [vmem:[#allocation6 + $0x20] sm:$0xff]
    %v220 = vld [vmem:[#allocation6 + $0x28] sm:$0xff]
    %v221 = vld [vmem:[#allocation6 + $0x30] sm:$0xff]
    %v222 = vld [vmem:[#allocation6 + $0x38] sm:$0xff]
    %v223 = vld [vmem:[#allocation6 + $0x40] sm:$0xff]
    %v224 = vld [vmem:[#allocation6 + $0x48] sm:$0xff]
    %v225 = vld [vmem:[#allocation6 + $0x50] sm:$0xff]
    %v226 = vld [vmem:[#allocation6 + $0x58] sm:$0xff]
    %v227 = vld [vmem:[#allocation6 + $0x60] sm:$0xff]
    %v228 = vld [vmem:[#allocation6 + $0x68] sm:$0xff]
    %v229 = vld [vmem:[#allocation6 + $0x70] sm:$0xff]
    %v230 = vld [vmem:[#allocation6 + $0x78] sm:$0xff]
    %v231 = vld [vmem:[#allocation6 + $0x80] sm:$0xff]
    %v232 = vld [vmem:[#allocation6 + $0x88] sm:$0xff]
    %v233 = vld [vmem:[#allocation6 + $0x90] sm:$0xff]
    %v234 = vld [vmem:[#allocation6 + $0x98] sm:$0xff]
    %v235 = vld [vmem:[#allocation6 + $0xa0] sm:$0xff]
    %v236 = vld [vmem:[#allocation6 + $0xa8] sm:$0xff]
    %v237 = vld [vmem:[#allocation6 + $0xb0] sm:$0xff]
    %v238 = vld [vmem:[#allocation6 + $0xb8] sm:$0xff]
    %v239 = vld [vmem:[#allocation6 + $0xc0] sm:$0xff]
    %v240 = vld [vmem:[#allocation6 + $0xc8] sm:$0xff]
    %v241 = vld [vmem:[#allocation6 + $0xd0] sm:$0xff]
    %v242 = vld [vmem:[#allocation6 + $0xd8] sm:$0xff]
    %v243 = vld [vmem:[#allocation6 + $0xe0] sm:$0xff]
    %v244 = vld [vmem:[#allocation6 + $0xe8] sm:$0xff]
    %v245 = vld [vmem:[#allocation6 + $0xf0] sm:$0xff]
    %v246 = vld [vmem:[#allocation6 + $0xf8] sm:$0xff]
    %v247 = vld [vmem:[%s6] sm:$0x1]
    %v249 = vperm.slane %v247, 0
    %251 = vmatpush.msra.mxu0 %v230
    %252 = vmatpush.msra.mxu0 %v229
    %253 = vmatpush.msra.mxu0 %v228
    %254 = vmatpush.msra.mxu0 %v227
    %255 = vmatpush.msra.mxu0 %v226
    %256 = vmatpush.msra.mxu0 %v225
    %257 = vmatpush.msra.mxu0 %v224
    %258 = vmatpush.msra.mxu0 %v223
    %259 = vmatpush.msra.mxu0 %v222
    %260 = vmatpush.msra.mxu0 %v221
    %261 = vmatpush.msra.mxu0 %v220
    %262 = vmatpush.msra.mxu0 %v219
    %263 = vmatpush.msra.mxu0 %v218
    %264 = vmatpush.msra.mxu0 %v217
    %265 = vmatpush.msra.mxu0 %v216
    %266 = vmatpush.msra.mxu0 %v215
    %267 = vmatmul.f32.gmra.mxu0 %v209
    %v268 = vpop.f32.mrf.mxu0
    %v269 = vadd.f32 %v249, %v268
    %270 = vmatmul.f32.gmra.mxu0 %v210
    %v271 = vpop.f32.mrf.mxu0
    %v272 = vadd.f32 %v249, %v271
    %273 = vdwg.mxu0
    %274 = vmatpush.msra.mxu0 %v246
    %275 = vmatpush.msra.mxu0 %v245
    %276 = vmatpush.msra.mxu0 %v244
    %277 = vmatpush.msra.mxu0 %v243
    %278 = vmatpush.msra.mxu0 %v242
    %279 = vmatpush.msra.mxu0 %v241
    %280 = vmatpush.msra.mxu0 %v240
    %281 = vmatpush.msra.mxu0 %v239
    %282 = vmatpush.msra.mxu0 %v238
    %283 = vmatpush.msra.mxu0 %v237
    %284 = vmatpush.msra.mxu0 %v236
    %285 = vmatpush.msra.mxu0 %v235
    %286 = vmatpush.msra.mxu0 %v234
    %287 = vmatpush.msra.mxu0 %v233
    %288 = vmatpush.msra.mxu0 %v232
    %289 = vmatpush.msra.mxu0 %v231
    %290 = vmatmul.f32.gmra.mxu0 %v213
    %v291 = vpop.f32.mrf.mxu0
    %v292 = vadd.f32 %v269, %v291
    %293 = vmatmul.f32.gmra.mxu0 %v214
    %v294 = vpop.f32.mrf.mxu0
    %v295 = vadd.f32 %v272, %v294
    %296 = vdwg.mxu0
    %v297 = vmax.f32 %v292, 0.0
    %v298 = vmax.f32 %v295, 0.0
    %299 = vst [vmem:[#allocation2] sm:$0xff] %v297
    %300 = vst [vmem:[#allocation2 + $0x8] sm:$0xff] %v298
    %v301 = vld [vmem:[#allocation2] ss:$8 sm:$0x3]
    %v302 = vld [vmem:[#allocation8] sm:$0xff]
    %v303 = vld [vmem:[#allocation8 + $0x8] sm:$0xff]
    %v304 = vld [vmem:[#allocation8 + $0x10] sm:$0xff]
    %v305 = vld [vmem:[#allocation8 + $0x18] sm:$0xff]
    %v306 = vld [vmem:[#allocation8 + $0x20] sm:$0xff]
    %v307 = vld [vmem:[#allocation8 + $0x28] sm:$0xff]
    %v308 = vld [vmem:[#allocation8 + $0x30] sm:$0xff]
    %v309 = vld [vmem:[#allocation8 + $0x38] sm:$0xff]
    %v310 = vld [vmem:[#allocation8 + $0x40] sm:$0xff]
    %v311 = vld [vmem:[#allocation8 + $0x48] sm:$0xff]
    %v312 = vld [vmem:[#allocation8 + $0x50] sm:$0xff]
    %v313 = vld [vmem:[#allocation8 + $0x58] sm:$0xff]
    %v314 = vld [vmem:[#allocation8 + $0x60] sm:$0xff]
    %v315 = vld [vmem:[#allocation8 + $0x68] sm:$0xff]
    %v316 = vld [vmem:[#allocation8 + $0x70] sm:$0xff]
    %v317 = vld [vmem:[#allocation8 + $0x78] sm:$0xff]
    %s318 = scalar_lea.vmem [#allocation2], 1
    %v319 = vld [vmem:[%s318] ss:$8 sm:$0x3]
    %s320 = scalar_lea.vmem [#allocation8], 128
    %v321 = vld [vmem:[%s320] sm:$0xff]
    %v322 = vld [vmem:[%s320 + $0x8] sm:$0xff]
    %v323 = vld [vmem:[%s320 + $0x10] sm:$0xff]
    %v324 = vld [vmem:[%s320 + $0x18] sm:$0xff]
    %v325 = vld [vmem:[%s320 + $0x20] sm:$0xff]
    %v326 = vld [vmem:[%s320 + $0x28] sm:$0xff]
    %v327 = vld [vmem:[%s320 + $0x30] sm:$0xff]
    %v328 = vld [vmem:[%s320 + $0x38] sm:$0xff]
    %v329 = vld [vmem:[%s320 + $0x40] sm:$0xff]
    %v330 = vld [vmem:[%s320 + $0x48] sm:$0xff]
    %v331 = vld [vmem:[%s320 + $0x50] sm:$0xff]
    %v332 = vld [vmem:[%s320 + $0x58] sm:$0xff]
    %v333 = vld [vmem:[%s320 + $0x60] sm:$0xff]
    %v334 = vld [vmem:[%s320 + $0x68] sm:$0xff]
    %v335 = vld [vmem:[%s320 + $0x70] sm:$0xff]
    %v336 = vld [vmem:[%s320 + $0x78] sm:$0xff]
    %337 = vmatpush.msra.mxu0 %v336
    %338 = vmatpush.msra.mxu0 %v335
    %339 = vmatpush.msra.mxu0 %v334
    %340 = vmatpush.msra.mxu0 %v333
    %341 = vmatpush.msra.mxu0 %v332
    %342 = vmatpush.msra.mxu0 %v331
    %343 = vmatpush.msra.mxu0 %v330
    %344 = vmatpush.msra.mxu0 %v329
    %345 = vmatpush.msra.mxu0 %v328
    %346 = vmatpush.msra.mxu0 %v327
    %347 = vmatpush.msra.mxu0 %v326
    %348 = vmatpush.msra.mxu0 %v325
    %349 = vmatpush.msra.mxu0 %v324
    %350 = vmatpush.msra.mxu0 %v323
    %351 = vmatpush.msra.mxu0 %v322
    %352 = vmatpush.msra.mxu0 %v321
    %353 = vmatmul.f32.gmra.mxu0 %v319
    %v354 = vpop.f32.mrf.mxu0
    %v355 = vadd.f32 0.0, %v354
    %356 = vdwg.mxu0
    %357 = vmatpush.msra.mxu0 %v317
    %358 = vmatpush.msra.mxu0 %v316
    %359 = vmatpush.msra.mxu0 %v315
    %360 = vmatpush.msra.mxu0 %v314
    %361 = vmatpush.msra.mxu0 %v313
    %362 = vmatpush.msra.mxu0 %v312
    %363 = vmatpush.msra.mxu0 %v311
    %364 = vmatpush.msra.mxu0 %v310
    %365 = vmatpush.msra.mxu0 %v309
    %366 = vmatpush.msra.mxu0 %v308
    %367 = vmatpush.msra.mxu0 %v307
    %368 = vmatpush.msra.mxu0 %v306
    %369 = vmatpush.msra.mxu0 %v305
    %370 = vmatpush.msra.mxu0 %v304
    %371 = vmatpush.msra.mxu0 %v303
    %372 = vmatpush.msra.mxu0 %v302
    %373 = vmatmul.f32.gmra.mxu0 %v301
    %v374 = vpop.f32.mrf.mxu0
    %v375 = vadd.f32 %v355, %v374
    %376 = vdwg.mxu0
    %s377 = scalar_lea.vmem [#allocation2], 2
    %v378 = vld [vmem:[%s377] ss:$8 sm:$0x3]
    %s379 = scalar_lea.vmem [#allocation8], 256
    %v380 = vld [vmem:[%s379] sm:$0xff]
    %v381 = vld [vmem:[%s379 + $0x8] sm:$0xff]
    %v382 = vld [vmem:[%s379 + $0x10] sm:$0xff]
    %v383 = vld [vmem:[%s379 + $0x18] sm:$0xff]
    %v384 = vld [vmem:[%s379 + $0x20] sm:$0xff]
    %v385 = vld [vmem:[%s379 + $0x28] sm:$0xff]
    %v386 = vld [vmem:[%s379 + $0x30] sm:$0xff]
    %v387 = vld [vmem:[%s379 + $0x38] sm:$0xff]
    %v388 = vld [vmem:[%s379 + $0x40] sm:$0xff]
    %v389 = vld [vmem:[%s379 + $0x48] sm:$0xff]
    %v390 = vld [vmem:[%s379 + $0x50] sm:$0xff]
    %v391 = vld [vmem:[%s379 + $0x58] sm:$0xff]
    %v392 = vld [vmem:[%s379 + $0x60] sm:$0xff]
    %v393 = vld [vmem:[%s379 + $0x68] sm:$0xff]
    %v394 = vld [vmem:[%s379 + $0x70] sm:$0xff]
    %v395 = vld [vmem:[%s379 + $0x78] sm:$0xff]
    %396 = vmatpush.msra.mxu0 %v395
    %397 = vmatpush.msra.mxu0 %v394
    %398 = vmatpush.msra.mxu0 %v393
    %399 = vmatpush.msra.mxu0 %v392
    %400 = vmatpush.msra.mxu0 %v391
    %401 = vmatpush.msra.mxu0 %v390
    %402 = vmatpush.msra.mxu0 %v389
    %403 = vmatpush.msra.mxu0 %v388
    %404 = vmatpush.msra.mxu0 %v387
    %405 = vmatpush.msra.mxu0 %v386
    %406 = vmatpush.msra.mxu0 %v385
    %407 = vmatpush.msra.mxu0 %v384
    %408 = vmatpush.msra.mxu0 %v383
    %409 = vmatpush.msra.mxu0 %v382
    %410 = vmatpush.msra.mxu0 %v381
    %411 = vmatpush.msra.mxu0 %v380
    %412 = vmatmul.f32.gmra.mxu0 %v378
    %v413 = vpop.f32.mrf.mxu0
    %v414 = vadd.f32 0.0, %v413
    %415 = vdwg.mxu0
    %v416 = vadd.f32 %v375, %v414
    %s417 = scalar_lea.vmem [#allocation2], 3
    %v418 = vld [vmem:[%s417] ss:$8 sm:$0x3]
    %s419 = scalar_lea.vmem [#allocation8], 384
    %v420 = vld [vmem:[%s419] sm:$0xff]
    %v421 = vld [vmem:[%s419 + $0x8] sm:$0xff]
    %v422 = vld [vmem:[%s419 + $0x10] sm:$0xff]
    %v423 = vld [vmem:[%s419 + $0x18] sm:$0xff]
    %v424 = vld [vmem:[%s419 + $0x20] sm:$0xff]
    %v425 = vld [vmem:[%s419 + $0x28] sm:$0xff]
    %v426 = vld [vmem:[%s419 + $0x30] sm:$0xff]
    %v427 = vld [vmem:[%s419 + $0x38] sm:$0xff]
    %v428 = vld [vmem:[%s419 + $0x40] sm:$0xff]
    %v429 = vld [vmem:[%s419 + $0x48] sm:$0xff]
    %v430 = vld [vmem:[%s419 + $0x50] sm:$0xff]
    %v431 = vld [vmem:[%s419 + $0x58] sm:$0xff]
    %v432 = vld [vmem:[%s419 + $0x60] sm:$0xff]
    %v433 = vld [vmem:[%s419 + $0x68] sm:$0xff]
    %v434 = vld [vmem:[%s419 + $0x70] sm:$0xff]
    %v435 = vld [vmem:[%s419 + $0x78] sm:$0xff]
    %436 = vmatpush.msra.mxu0 %v435
    %437 = vmatpush.msra.mxu0 %v434
    %438 = vmatpush.msra.mxu0 %v433
    %439 = vmatpush.msra.mxu0 %v432
    %440 = vmatpush.msra.mxu0 %v431
    %441 = vmatpush.msra.mxu0 %v430
    %442 = vmatpush.msra.mxu0 %v429
    %443 = vmatpush.msra.mxu0 %v428
    %444 = vmatpush.msra.mxu0 %v427
    %445 = vmatpush.msra.mxu0 %v426
    %446 = vmatpush.msra.mxu0 %v425
    %447 = vmatpush.msra.mxu0 %v424
    %448 = vmatpush.msra.mxu0 %v423
    %449 = vmatpush.msra.mxu0 %v422
    %450 = vmatpush.msra.mxu0 %v421
    %451 = vmatpush.msra.mxu0 %v420
    %452 = vmatmul.f32.gmra.mxu0 %v418
    %v453 = vpop.f32.mrf.mxu0
    %v454 = vadd.f32 0.0, %v453
    %455 = vdwg.mxu0
    %v456 = vadd.f32 %v416, %v454
    %s457 = scalar_lea.vmem [#allocation2], 4
    %v458 = vld [vmem:[%s457] ss:$8 sm:$0x3]
    %s459 = scalar_lea.vmem [#allocation8], 512
    %v460 = vld [vmem:[%s459] sm:$0xff]
    %v461 = vld [vmem:[%s459 + $0x8] sm:$0xff]
    %v462 = vld [vmem:[%s459 + $0x10] sm:$0xff]
    %v463 = vld [vmem:[%s459 + $0x18] sm:$0xff]
    %v464 = vld [vmem:[%s459 + $0x20] sm:$0xff]
    %v465 = vld [vmem:[%s459 + $0x28] sm:$0xff]
    %v466 = vld [vmem:[%s459 + $0x30] sm:$0xff]
    %v467 = vld [vmem:[%s459 + $0x38] sm:$0xff]
    %v468 = vld [vmem:[%s459 + $0x40] sm:$0xff]
    %v469 = vld [vmem:[%s459 + $0x48] sm:$0xff]
    %v470 = vld [vmem:[%s459 + $0x50] sm:$0xff]
    %v471 = vld [vmem:[%s459 + $0x58] sm:$0xff]
    %v472 = vld [vmem:[%s459 + $0x60] sm:$0xff]
    %v473 = vld [vmem:[%s459 + $0x68] sm:$0xff]
    %v474 = vld [vmem:[%s459 + $0x70] sm:$0xff]
    %v475 = vld [vmem:[%s459 + $0x78] sm:$0xff]
    %476 = vmatpush.msra.mxu0 %v475
    %477 = vmatpush.msra.mxu0 %v474
    %478 = vmatpush.msra.mxu0 %v473
    %479 = vmatpush.msra.mxu0 %v472
    %480 = vmatpush.msra.mxu0 %v471
    %481 = vmatpush.msra.mxu0 %v470
    %482 = vmatpush.msra.mxu0 %v469
    %483 = vmatpush.msra.mxu0 %v468
    %484 = vmatpush.msra.mxu0 %v467
    %485 = vmatpush.msra.mxu0 %v466
    %486 = vmatpush.msra.mxu0 %v465
    %487 = vmatpush.msra.mxu0 %v464
    %488 = vmatpush.msra.mxu0 %v463
    %489 = vmatpush.msra.mxu0 %v462
    %490 = vmatpush.msra.mxu0 %v461
    %491 = vmatpush.msra.mxu0 %v460
    %492 = vmatmul.f32.gmra.mxu0 %v458
    %v493 = vpop.f32.mrf.mxu0
    %v494 = vadd.f32 0.0, %v493
    %495 = vdwg.mxu0
    %v496 = vadd.f32 %v456, %v494
    %s497 = scalar_lea.vmem [#allocation2], 5
    %v498 = vld [vmem:[%s497] ss:$8 sm:$0x3]
    %s499 = scalar_lea.vmem [#allocation8], 640
    %v500 = vld [vmem:[%s499] sm:$0xff]
    %v501 = vld [vmem:[%s499 + $0x8] sm:$0xff]
    %v502 = vld [vmem:[%s499 + $0x10] sm:$0xff]
    %v503 = vld [vmem:[%s499 + $0x18] sm:$0xff]
    %v504 = vld [vmem:[%s499 + $0x20] sm:$0xff]
    %v505 = vld [vmem:[%s499 + $0x28] sm:$0xff]
    %v506 = vld [vmem:[%s499 + $0x30] sm:$0xff]
    %v507 = vld [vmem:[%s499 + $0x38] sm:$0xff]
    %v508 = vld [vmem:[%s499 + $0x40] sm:$0xff]
    %v509 = vld [vmem:[%s499 + $0x48] sm:$0xff]
    %v510 = vld [vmem:[%s499 + $0x50] sm:$0xff]
    %v511 = vld [vmem:[%s499 + $0x58] sm:$0xff]
    %v512 = vld [vmem:[%s499 + $0x60] sm:$0xff]
    %v513 = vld [vmem:[%s499 + $0x68] sm:$0xff]
    %v514 = vld [vmem:[%s499 + $0x70] sm:$0xff]
    %v515 = vld [vmem:[%s499 + $0x78] sm:$0xff]
    %516 = vmatpush.msra.mxu0 %v515
    %517 = vmatpush.msra.mxu0 %v514
    %518 = vmatpush.msra.mxu0 %v513
    %519 = vmatpush.msra.mxu0 %v512
    %520 = vmatpush.msra.mxu0 %v511
    %521 = vmatpush.msra.mxu0 %v510
    %522 = vmatpush.msra.mxu0 %v509
    %523 = vmatpush.msra.mxu0 %v508
    %524 = vmatpush.msra.mxu0 %v507
    %525 = vmatpush.msra.mxu0 %v506
    %526 = vmatpush.msra.mxu0 %v505
    %527 = vmatpush.msra.mxu0 %v504
    %528 = vmatpush.msra.mxu0 %v503
    %529 = vmatpush.msra.mxu0 %v502
    %530 = vmatpush.msra.mxu0 %v501
    %531 = vmatpush.msra.mxu0 %v500
    %532 = vmatmul.f32.gmra.mxu0 %v498
    %v533 = vpop.f32.mrf.mxu0
    %v534 = vadd.f32 0.0, %v533
    %535 = vdwg.mxu0
    %v536 = vadd.f32 %v496, %v534
    %v537 = vld [vmem:[%s8] sm:$0x1]
    %v539 = vperm.slane %v537, 0
    %v541 = vadd.f32 %v536, %v539
    %542 = vst [vmem:[#allocation9] sm:$0x3] %v541
    // Predicated region
    $region50: #{cnn17_forward.1} parent=1 // pred_check
      _
    $region51: #{cnn17_forward.1} parent=1 // pred_check_branch
      %544 = sbr.rel (0) target = $region53
    $region52: #{cnn17_forward.1} parent=1 // pred_region
      %546 = vsyncadd [#allocation5], 0
      %s548 = sshll.u32 [#allocation9], 4
      %s549 = int_to_ptr.vmem [resolvable:$true] %s548
      %s550 = sshll.u32 %s9, 4
      %s551 = int_to_ptr.hbm [resolvable:$true] %s550
      %553 = dma.vmem_to_hbm [thread:$0]  %s549, 32, %s551, [#allocation5]
    $region53: #{cnn17_forward.1} parent=1 // pred_fallthru
      _
    // Predicated region
    $region54: #{cnn17_forward.1} parent=1 // pred_check
      _
    $region55: #{cnn17_forward.1} parent=1 // pred_check_branch
      %555 = sbr.rel (0) target = $region57
    $region56: #{cnn17_forward.1} parent=1 // pred_region
      %557 = dma.done [#allocation5], 32
    $region57: #{cnn17_forward.1} parent=1 // pred_fallthru
      _
    %558 = vsyncpa [#allocation4], 1
    %559 = vsyncpa [#allocation7], 1
    %560 = vsyncpa [#allocation5], 1

</llo_original>
